<compile_context>
chip_gen: v7x
topology: tpu7x:2x2x1
jax: 0.10.0
libtpu: 0.0.40
codegen_flags: <defaults>
</compile_context>

<pallas_src>
import math

import jax
import jax.numpy as jnp
from jax.experimental import pallas as pl
from jax.experimental.pallas import tpu as pltpu

D_MODEL = 32
HIDDEN = 50               # fixed by the module definition
NUM_LABELS_N_MASKS = 5    # synthetic value for the config constant


def _gelu_erf(x):
    # exact erf-based gelu, matching the reference `gelu` function
    return x * 0.5 * (1.0 + jax.lax.erf(x / math.sqrt(2.0)))


def _head_kernel(x_ref, w1t_ref, b1t_ref, w2t_ref, b2t_ref, ot_ref):
    # x_ref:   (TILE_M, d_model)
    # w1t_ref: (HIDDEN, d_model)       b1t_ref: (HIDDEN, 1)
    # w2t_ref: (num_labels, HIDDEN)    b2t_ref: (num_labels, 1)
    # ot_ref:  (num_labels, TILE_M)    -- transposed, lane-dense output tile
    #
    # h^T = W1^T . x^T : contract the d_model (last) dims of both operands so
    # the hidden activation lands as (HIDDEN, TILE_M) with TILE_M on the lane
    # axis -> lane-dense gelu (~2.3x fewer VALU vregs than (TILE_M, HIDDEN)).
    h_t = jax.lax.dot_general(
        w1t_ref[...], x_ref[...],
        dimension_numbers=(((1,), (1,)), ((), ())),
        preferred_element_type=jnp.float32)              # (HIDDEN, TILE_M)
    h_t = _gelu_erf(h_t + b1t_ref[...])
    # y^T = W2^T . h^T : plain (M,K)x(K,N) matmul, TILE_M stays on lanes.
    y_t = jnp.dot(w2t_ref[...], h_t,
                  preferred_element_type=jnp.float32)    # (num_labels, TILE_M)
    ot_ref[...] = (y_t + b2t_ref[...]).astype(ot_ref.dtype)


def _round_up(x, m):
    return (x + m - 1) // m * m


def bartpho_mask_n_prediction_head(sequence_output, w_dense, b_dense,
                                    w_proj, b_proj, *, tile_m_max=8192):
    """sequence_output: (B, S, d_model) float32.
    w_dense: (d_model, 50), b_dense: (50,)
    w_proj:  (50, num_labels), b_proj: (num_labels,)
    Returns prediction_scores: (B, S, num_labels).
    """
    B, S, D = sequence_output.shape
    N = B * S
    hidden = w_dense.shape[1]
    num_labels = w_proj.shape[1]

    # Row tile: multiple of 128, large enough to amortize ~0.35us/step grid
    # overhead, but capped so the grid keeps >= ~8 steps (lets v7x shard the
    # "parallel" axis across both TensorCores) and so tiny inputs don't pay
    # for a huge tile.
    tile_m = min(tile_m_max, _round_up(pl.cdiv(N, 8), 128))
    tile_m = max(tile_m, 128)
    grid = (pl.cdiv(N, tile_m),)          # ragged last block -> no jnp.pad copy

    x2d = sequence_output.reshape(N, D)
    w1t = jnp.transpose(w_dense)          # (hidden, d_model), tiny
    b1t = b_dense.reshape(hidden, 1)
    w2t = jnp.transpose(w_proj)           # (num_labels, hidden), tiny
    b2t = b_proj.reshape(num_labels, 1)

    # Advisory roofline hint for XLA's scheduler.
    cost = pl.CostEstimate(
        flops=2 * N * (D * hidden + hidden * num_labels),
        transcendentals=N * hidden,
        bytes_accessed=N * (D + num_labels) * 4
        + (D * hidden + hidden + hidden * num_labels + num_labels) * 4,
    )

    out_t = pl.pallas_call(
        _head_kernel,
        out_shape=jax.ShapeDtypeStruct((num_labels, N), sequence_output.dtype),
        grid=grid,
        in_specs=[
            # Row-tiled activation stream (pipelined, double-buffered).
            pl.BlockSpec((tile_m, D), lambda i: (i, 0)),
            # Weights / biases: constant block index -> resident in VMEM.
            pl.BlockSpec((hidden, D), lambda i: (0, 0)),
            pl.BlockSpec((hidden, 1), lambda i: (0, 0)),
            pl.BlockSpec((num_labels, hidden), lambda i: (0, 0)),
            pl.BlockSpec((num_labels, 1), lambda i: (0, 0)),
        ],
        out_specs=pl.BlockSpec((num_labels, tile_m), lambda i: (0, i)),
        compiler_params=pltpu.CompilerParams(
            dimension_semantics=("parallel",),   # rows independent -> both v7x TCs
            # ~10-12 MiB working set at tile_m=8192 (x tile lane-pads 32->128);
            # 32 MiB is safe on v5e/v6e (128 MiB) and v7x (64 MiB physical).
            vmem_limit_bytes=32 * 1024 * 1024,
        ),
        cost_estimate=cost,
    )(x2d, w1t, b1t, w2t, b2t)

    # Tiny (num_labels, N) transpose back to the PyTorch output layout.  A
    # consumer that accepts the transposed layout can use `out_t` directly and
    # skip this extra pass.
    return jnp.transpose(out_t).reshape(B, S, num_labels)


def _reference(sequence_output, w_dense, b_dense, w_proj, b_proj):
    h = jnp.einsum("bsd,dh->bsh", sequence_output, w_dense) + b_dense
    h = _gelu_erf(h)
    return jnp.einsum("bsh,hl->bsl", h, w_proj) + b_proj


if __name__ == "__main__":
    key = jax.random.PRNGKey(0)
    k_x, k_w1, k_b1, k_w2, k_b2 = jax.random.split(key, 5)

    B, S = 2, 8
    sequence_output = jax.random.normal(k_x, (B, S, D_MODEL), dtype=jnp.float32)

    # Deterministic parameter init (nn.Linear-style uniform bounds).
    lim1 = 1.0 / math.sqrt(D_MODEL)
    lim2 = 1.0 / math.sqrt(HIDDEN)
    w_dense = jax.random.uniform(k_w1, (D_MODEL, HIDDEN), jnp.float32, -lim1, lim1)
    b_dense = jax.random.uniform(k_b1, (HIDDEN,), jnp.float32, -lim1, lim1)
    w_proj = jax.random.uniform(k_w2, (HIDDEN, NUM_LABELS_N_MASKS), jnp.float32, -lim2, lim2)
    b_proj = jax.random.uniform(k_b2, (NUM_LABELS_N_MASKS,), jnp.float32, -lim2, lim2)

    scores = bartpho_mask_n_prediction_head(
        sequence_output, w_dense, b_dense, w_proj, b_proj)
    scores = jax.block_until_ready(scores)

    ref = _reference(sequence_output, w_dense, b_dense, w_proj, b_proj)
    assert scores.shape == (B, S, NUM_LABELS_N_MASKS)
    assert jnp.allclose(scores, ref, atol=1e-5, rtol=1e-5)

    print("KERNEL_OK")
</pallas_src>

<mosaic_0001>
module attributes {stable_mosaic.version = 11 : i64} {
  func.func @_head_kernel(%arg0: i32, %arg1: memref<128x32xf32, #tpu.memory_space<vmem>>, %arg2: memref<50x32xf32, #tpu.memory_space<vmem>>, %arg3: memref<50x1xf32, #tpu.memory_space<vmem>>, %arg4: memref<5x50xf32, #tpu.memory_space<vmem>>, %arg5: memref<5x1xf32, #tpu.memory_space<vmem>>, %arg6: memref<5x128xf32, #tpu.memory_space<vmem>>) attributes {dimension_semantics = [#tpu.dimension_semantics<parallel>], iteration_bounds = array<i64: 1>, scalar_prefetch = 0 : i64, scratch_operands = 0 : i64, tpu.core_type = #tpu.core_type<tc>, window_params = [{transform_indices = @transform_0, window_bounds = array<i64: 128, 32>}, {pipeline_mode = #tpu.pipeline_mode<synchronous>, transform_indices = @transform_1, window_bounds = array<i64: 50, 32>}, {pipeline_mode = #tpu.pipeline_mode<synchronous>, transform_indices = @transform_2, window_bounds = array<i64: 50, 1>}, {pipeline_mode = #tpu.pipeline_mode<synchronous>, transform_indices = @transform_3, window_bounds = array<i64: 5, 50>}, {pipeline_mode = #tpu.pipeline_mode<synchronous>, transform_indices = @transform_4, window_bounds = array<i64: 5, 1>}, {transform_indices = @transform_5, window_bounds = array<i64: 5, 128>}]} {
    %c0 = arith.constant 0 : index
    %c0_0 = arith.constant 0 : index
    %0 = vector.load %arg2[%c0, %c0_0] : memref<50x32xf32, #tpu.memory_space<vmem>>, vector<50x32xf32>
    %c0_1 = arith.constant 0 : index
    %c0_2 = arith.constant 0 : index
    %1 = vector.load %arg1[%c0_1, %c0_2] : memref<128x32xf32, #tpu.memory_space<vmem>>, vector<128x32xf32>
    %cst = arith.constant dense<0.000000e+00> : vector<50x128xf32>
    %2 = tpu.matmul %0, %1, %cst {dimension_numbers = #tpu.dot_dimension_numbers<[1], [1], [0], [0], [0, 0, 1, 0], [], []>} : vector<50x32xf32>, vector<128x32xf32>, vector<50x128xf32> -> vector<50x128xf32>
    %c0_3 = arith.constant 0 : index
    %c0_4 = arith.constant 0 : index
    %3 = vector.load %arg3[%c0_3, %c0_4] : memref<50x1xf32, #tpu.memory_space<vmem>>, vector<50x1xf32>
    %4 = vector.broadcast %3 : vector<50x1xf32> to vector<50x128xf32>
    %5 = arith.addf %2, %4 : vector<50x128xf32>
    %cst_5 = arith.constant 5.000000e-01 : f32
    %6 = vector.broadcast %cst_5 : f32 to vector<50x128xf32>
    %7 = arith.mulf %5, %6 : vector<50x128xf32>
    %cst_6 = arith.constant 1.41421354 : f32
    %8 = vector.broadcast %cst_6 : f32 to vector<50x128xf32>
    %9 = arith.divf %5, %8 : vector<50x128xf32>
    %10 = math.erf %9 : vector<50x128xf32>
    %cst_7 = arith.constant 1.000000e+00 : f32
    %11 = vector.broadcast %cst_7 : f32 to vector<50x128xf32>
    %12 = arith.addf %11, %10 : vector<50x128xf32>
    %13 = arith.mulf %7, %12 : vector<50x128xf32>
    %c0_8 = arith.constant 0 : index
    %c0_9 = arith.constant 0 : index
    %14 = vector.load %arg4[%c0_8, %c0_9] : memref<5x50xf32, #tpu.memory_space<vmem>>, vector<5x50xf32>
    %cst_10 = arith.constant dense<0.000000e+00> : vector<5x128xf32>
    %15 = tpu.matmul %14, %13, %cst_10 {dimension_numbers = #tpu.dot_dimension_numbers<[1], [0], [0], [1], [0, 0, 1, 1], [], []>} : vector<5x50xf32>, vector<50x128xf32>, vector<5x128xf32> -> vector<5x128xf32>
    %c0_11 = arith.constant 0 : index
    %c0_12 = arith.constant 0 : index
    %16 = vector.load %arg5[%c0_11, %c0_12] : memref<5x1xf32, #tpu.memory_space<vmem>>, vector<5x1xf32>
    %17 = vector.broadcast %16 : vector<5x1xf32> to vector<5x128xf32>
    %18 = arith.addf %15, %17 : vector<5x128xf32>
    %c0_13 = arith.constant 0 : index
    %c0_14 = arith.constant 0 : index
    %19 = vector.load %arg6[%c0_13, %c0_14] : memref<5x128xf32, #tpu.memory_space<vmem>>, vector<5x128xf32>
    tpu.vector_store %arg6[%c0_13, %c0_14], %18 {strides = array<i32>} : memref<5x128xf32, #tpu.memory_space<vmem>>, vector<5x128xf32>,
    return
  }
  func.func @transform_0(%arg0: i32) -> (i32, i32) {
    %c0_i32 = arith.constant 0 : i32
    %c0_i32_0 = arith.constant 0 : i32
    return %arg0, %c0_i32 : i32, i32
  }
  func.func @transform_1(%arg0: i32) -> (i32, i32) {
    %c0_i32 = arith.constant 0 : i32
    %c0_i32_0 = arith.constant 0 : i32
    %c0_i32_1 = arith.constant 0 : i32
    return %c0_i32, %c0_i32_0 : i32, i32
  }
  func.func @transform_2(%arg0: i32) -> (i32, i32) {
    %c0_i32 = arith.constant 0 : i32
    %c0_i32_0 = arith.constant 0 : i32
    %c0_i32_1 = arith.constant 0 : i32
    return %c0_i32, %c0_i32_0 : i32, i32
  }
  func.func @transform_3(%arg0: i32) -> (i32, i32) {
    %c0_i32 = arith.constant 0 : i32
    %c0_i32_0 = arith.constant 0 : i32
    %c0_i32_1 = arith.constant 0 : i32
    return %c0_i32, %c0_i32_0 : i32, i32
  }
  func.func @transform_4(%arg0: i32) -> (i32, i32) {
    %c0_i32 = arith.constant 0 : i32
    %c0_i32_0 = arith.constant 0 : i32
    %c0_i32_1 = arith.constant 0 : i32
    return %c0_i32, %c0_i32_0 : i32, i32
  }
  func.func @transform_5(%arg0: i32) -> (i32, i32) {
    %c0_i32 = arith.constant 0 : i32
    %c0_i32_0 = arith.constant 0 : i32
    return %c0_i32, %arg0 : i32, i32
  }
}

</mosaic_0001>

<llo_original>
// kernel: tpu_custom_call.1
$region0: #{tpu_custom_call.1}
  #allocation0 [shape = 'u32[]', space=smem, size = 0x4, offset = 0x4, fixed_abs, tag = 'smem constant byte address 0x4 - core index']
  #allocation1 [shape = 'u32[144,128]{1,0:T(1,128)}', space=vmem, size = 0x12000, scoped, tag = 'internal scratch']
  %s0 = inlined_call_operand.vmem [shape: f32[16,32], index: 0, kind: input, shape index: {}]
  %s1 = inlined_call_operand.vmem [shape: f32[50,32], index: 1, kind: input, shape index: {}]
  %s2 = inlined_call_operand.vmem [shape: f32[50,1], index: 2, kind: input, shape index: {}]
  %s3 = inlined_call_operand.vmem [shape: f32[5,50], index: 3, kind: input, shape index: {}]
  %s4 = inlined_call_operand.vmem [shape: f32[5,1], index: 4, kind: input, shape index: {}]
  %s5 = inlined_call_operand.hbm [shape: f32[5,16], index: 5, kind: output, shape index: {}]
  %s6 = sld [smem:[#allocation0]]
  $region30: #{tpu_custom_call.1} parent=0
    _
  %s8 = ssub.s32 1, %s6
  %s9 = scalar_select 0, %s8, %s6
  $region1: #{tpu_custom_call.1} parent=0
    #allocation2 [shape = 'u8[4096]{0}', space=vmem, size = 0x1000, scoped, tag = 'output window, operand 0, single buffered']
    #allocation3 [shape = 's32[1]{0}', space=sflag, size = 0x4, scoped, tag = 'scoped memory for tpu_custom_call.1']
    %10 = vsyncpa [#allocation3], 0
    // Predicated region
    $region2: #{tpu_custom_call.1} parent=1 // pred_check
      _
    $region3: #{tpu_custom_call.1} parent=1 // pred_check_branch
      %12 = sbr.rel (0) target = $region5
    $region4: #{tpu_custom_call.1} parent=1 // pred_region
      _
    $region5: #{tpu_custom_call.1} parent=1 // pred_fallthru
      _
    // Predicated region
    $region6: #{tpu_custom_call.1} parent=1 // pred_check
      _
    $region7: #{tpu_custom_call.1} parent=1 // pred_check_branch
      %14 = sbr.rel (0) target = $region9
    $region8: #{tpu_custom_call.1} parent=1 // pred_region
      _
    $region9: #{tpu_custom_call.1} parent=1 // pred_fallthru
      _
    // Predicated region
    $region10: #{tpu_custom_call.1} parent=1 // pred_check
      _
    $region11: #{tpu_custom_call.1} parent=1 // pred_check_branch
      %16 = sbr.rel (0) target = $region13
    $region12: #{tpu_custom_call.1} parent=1 // pred_region
      _
    $region13: #{tpu_custom_call.1} parent=1 // pred_fallthru
      _
    // Predicated region
    $region14: #{tpu_custom_call.1} parent=1 // pred_check
      _
    $region15: #{tpu_custom_call.1} parent=1 // pred_check_branch
      %18 = sbr.rel (0) target = $region17
    $region16: #{tpu_custom_call.1} parent=1 // pred_region
      _
    $region17: #{tpu_custom_call.1} parent=1 // pred_fallthru
      _
    // Predicated region
    $region18: #{tpu_custom_call.1} parent=1 // pred_check
      _
    $region19: #{tpu_custom_call.1} parent=1 // pred_check_branch
      %20 = sbr.rel (0) target = $region21
    $region20: #{tpu_custom_call.1} parent=1 // pred_region
      _
    $region21: #{tpu_custom_call.1} parent=1 // pred_fallthru
      _
    %v21 = vld [vmem:[%s1] sm:$0xff]
    %v22 = vld [vmem:[%s1 + $0x8] sm:$0xff]
    %v23 = vld [vmem:[%s1 + $0x10] sm:$0xff]
    %v24 = vld [vmem:[%s1 + $0x18] sm:$0xff]
    %v25 = vld [vmem:[%s1 + $0x20] sm:$0xff]
    %v26 = vld [vmem:[%s1 + $0x28] sm:$0xff]
    %v27 = vld [vmem:[%s1 + $0x30] sm:$0x3]
    %v28 = vld [vmem:[%s0] sm:$0xff]
    %v29 = vld [vmem:[%s0 + $0x8] sm:$0xff]
    %v30 = vld [vmem:[%s0 + $0x10] sm:$0xff]
    %v31 = vld [vmem:[%s0 + $0x18] sm:$0xff]
    %v32 = vld [vmem:[%s0 + $0x20] sm:$0xff]
    %v33 = vld [vmem:[%s0 + $0x28] sm:$0xff]
    %v34 = vld [vmem:[%s0 + $0x30] sm:$0xff]
    %v35 = vld [vmem:[%s0 + $0x38] sm:$0xff]
    %v36 = vld [vmem:[%s0 + $0x40] sm:$0xff]
    %v37 = vld [vmem:[%s0 + $0x48] sm:$0xff]
    %v38 = vld [vmem:[%s0 + $0x50] sm:$0xff]
    %v39 = vld [vmem:[%s0 + $0x58] sm:$0xff]
    %v40 = vld [vmem:[%s0 + $0x60] sm:$0xff]
    %v41 = vld [vmem:[%s0 + $0x68] sm:$0xff]
    %v42 = vld [vmem:[%s0 + $0x70] sm:$0xff]
    %v43 = vld [vmem:[%s0 + $0x78] sm:$0xff]
    %v44 = vld [vmem:[%s2] sm:$0xff]
    %v45 = vld [vmem:[%s2 + $0x8] sm:$0xff]
    %v46 = vld [vmem:[%s2 + $0x10] sm:$0xff]
    %v47 = vld [vmem:[%s2 + $0x18] sm:$0xff]
    %v48 = vld [vmem:[%s2 + $0x20] sm:$0xff]
    %v49 = vld [vmem:[%s2 + $0x28] sm:$0xff]
    %v50 = vld [vmem:[%s2 + $0x30] sm:$0x3]
    %52 = vset.pattern.permute.xlu0 0
    %53 = vperm.xlu0 %52, %v44
    %v54 = vpop.permute.xlu0 %53
    %57 = vset.pattern.permute.xlu0 0
    %58 = vperm.xlu0 %57, %v45
    %v59 = vpop.permute.xlu0 %58
    %62 = vset.pattern.permute.xlu0 0
    %63 = vperm.xlu0 %62, %v46
    %v64 = vpop.permute.xlu0 %63
    %67 = vset.pattern.permute.xlu0 0
    %68 = vperm.xlu0 %67, %v47
    %v69 = vpop.permute.xlu0 %68
    %72 = vset.pattern.permute.xlu0 0
    %73 = vperm.xlu0 %72, %v48
    %v74 = vpop.permute.xlu0 %73
    %77 = vset.pattern.permute.xlu0 0
    %78 = vperm.xlu0 %77, %v49
    %v79 = vpop.permute.xlu0 %78
    %82 = vset.pattern.permute.xlu0 0
    %83 = vperm.xlu0 %82, %v50
    %v84 = vpop.permute.xlu0 %83
    %vm86 = vcmask 261120
    %v88 = vsel %vm86, %v21, 0
    %v91 = vsel %vm86, %v22, 0
    %v94 = vsel %vm86, %v23, 0
    %v97 = vsel %vm86, %v24, 0
    %v100 = vsel %vm86, %v25, 0
    %v103 = vsel %vm86, %v26, 0
    %v106 = vsel %vm86, %v27, 0
    %v109 = vsel %vm86, %v28, 0
    %v112 = vsel %vm86, %v29, 0
    %v115 = vsel %vm86, %v30, 0
    %v118 = vsel %vm86, %v31, 0
    %v121 = vsel %vm86, %v32, 0
    %v124 = vsel %vm86, %v33, 0
    %v127 = vsel %vm86, %v34, 0
    %v130 = vsel %vm86, %v35, 0
    %v133 = vsel %vm86, %v36, 0
    %v136 = vsel %vm86, %v37, 0
    %v139 = vsel %vm86, %v38, 0
    %v142 = vsel %vm86, %v39, 0
    %v145 = vsel %vm86, %v40, 0
    %v148 = vsel %vm86, %v41, 0
    %v151 = vsel %vm86, %v42, 0
    %v154 = vsel %vm86, %v43, 0
    %156 = vmatprep.subr.mxu0 0.0
    %157 = vmatpush1.xpose.msra.mxu0 %v109
    %158 = vmatprep.subr.mxu0 0.0
    %159 = vmatpush1.xpose.msra.mxu0 %v112
    %160 = vmatprep.subr.mxu0 0.0
    %161 = vmatpush1.xpose.msra.mxu0 %v115
    %162 = vmatprep.subr.mxu0 0.0
    %163 = vmatpush1.xpose.msra.mxu0 %v118
    %164 = vmatprep.subr.mxu0 0.0
    %165 = vmatpush1.xpose.msra.mxu0 %v121
    %166 = vmatprep.subr.mxu0 0.0
    %167 = vmatpush1.xpose.msra.mxu0 %v124
    %168 = vmatprep.subr.mxu0 0.0
    %169 = vmatpush1.xpose.msra.mxu0 %v127
    %170 = vmatprep.subr.mxu0 0.0
    %171 = vmatpush1.xpose.msra.mxu0 %v130
    %172 = vmatprep.subr.mxu0 0.0
    %173 = vmatpush1.xpose.msra.mxu0 %v133
    %174 = vmatprep.subr.mxu0 0.0
    %175 = vmatpush1.xpose.msra.mxu0 %v136
    %176 = vmatprep.subr.mxu0 0.0
    %177 = vmatpush1.xpose.msra.mxu0 %v139
    %178 = vmatprep.subr.mxu0 0.0
    %179 = vmatpush1.xpose.msra.mxu0 %v142
    %180 = vmatprep.subr.mxu0 0.0
    %181 = vmatpush1.xpose.msra.mxu0 %v145
    %182 = vmatprep.subr.mxu0 0.0
    %183 = vmatpush1.xpose.msra.mxu0 %v148
    %184 = vmatprep.subr.mxu0 0.0
    %185 = vmatpush1.xpose.msra.mxu0 %v151
    %186 = vmatprep.subr.mxu0 0.0
    %187 = vmatpush1.xpose.msra.mxu0 %v154
    %188 = vmatprep.subr.mxu0 0.0
    %189 = vmatpush1.xpose.msra.mxu0 0.0
    %190 = vmatprep.subr.mxu0 0.0
    %191 = vmatpush1.xpose.msra.mxu0 0.0
    %192 = vmatprep.subr.mxu0 0.0
    %193 = vmatpush1.xpose.msra.mxu0 0.0
    %194 = vmatprep.subr.mxu0 0.0
    %195 = vmatpush1.xpose.msra.mxu0 0.0
    %196 = vmatprep.subr.mxu0 0.0
    %197 = vmatpush1.xpose.msra.mxu0 0.0
    %198 = vmatprep.subr.mxu0 0.0
    %199 = vmatpush1.xpose.msra.mxu0 0.0
    %200 = vmatprep.subr.mxu0 0.0
    %201 = vmatpush1.xpose.msra.mxu0 0.0
    %202 = vmatprep.subr.mxu0 0.0
    %203 = vmatpush1.xpose.msra.mxu0 0.0
    %204 = vmatprep.subr.mxu0 0.0
    %205 = vmatpush1.xpose.msra.mxu0 0.0
    %206 = vmatprep.subr.mxu0 0.0
    %207 = vmatpush1.xpose.msra.mxu0 0.0
    %208 = vmatprep.subr.mxu0 0.0
    %209 = vmatpush1.xpose.msra.mxu0 0.0
    %210 = vmatprep.subr.mxu0 0.0
    %211 = vmatpush1.xpose.msra.mxu0 0.0
    %212 = vmatprep.subr.mxu0 0.0
    %213 = vmatpush1.xpose.msra.mxu0 0.0
    %214 = vmatprep.subr.mxu0 0.0
    %215 = vmatpush1.xpose.msra.mxu0 0.0
    %216 = vmatprep.subr.mxu0 0.0
    %217 = vmatpush1.xpose.msra.mxu0 0.0
    %218 = vmatprep.subr.mxu0 0.0
    %219 = vmatpush1.xpose.msra.mxu0 0.0
    %220 = vmatprep.mubr.f32.mxu0 0.0
    %221 = vmatmul.mubr.f32.gmra.mrb[0].mxu0 %v88
    %v222 = vpop.f32.mrb[0].mxu0
    %v223 = vadd.f32 %v54, %v222
    %v224 = vpop.f32.mrb[0].mxu0
    %225 = vmatprep.mubr.f32.mxu0 0.0
    %226 = vmatmul.mubr.f32.gmra.mrb[0].mxu0 %v91
    %v227 = vpop.f32.mrb[0].mxu0
    %v228 = vadd.f32 %v59, %v227
    %v229 = vpop.f32.mrb[0].mxu0
    %230 = vmatprep.mubr.f32.mxu0 0.0
    %231 = vmatmul.mubr.f32.gmra.mrb[0].mxu0 %v94
    %v232 = vpop.f32.mrb[0].mxu0
    %v233 = vadd.f32 %v64, %v232
    %v234 = vpop.f32.mrb[0].mxu0
    %235 = vmatprep.mubr.f32.mxu0 0.0
    %236 = vmatmul.mubr.f32.gmra.mrb[0].mxu0 %v97
    %v237 = vpop.f32.mrb[0].mxu0
    %v238 = vadd.f32 %v69, %v237
    %v239 = vpop.f32.mrb[0].mxu0
    %240 = vmatprep.mubr.f32.mxu0 0.0
    %241 = vmatmul.mubr.f32.gmra.mrb[0].mxu0 %v100
    %v242 = vpop.f32.mrb[0].mxu0
    %v243 = vadd.f32 %v74, %v242
    %v244 = vpop.f32.mrb[0].mxu0
    %245 = vmatprep.mubr.f32.mxu0 0.0
    %246 = vmatmul.mubr.f32.gmra.mrb[0].mxu0 %v103
    %v247 = vpop.f32.mrb[0].mxu0
    %v248 = vadd.f32 %v79, %v247
    %v249 = vpop.f32.mrb[0].mxu0
    %250 = vmatprep.mubr.f32.mxu0 0.0
    %251 = vmatmul.mubr.f32.gmra.mrb[0].mxu0 %v106
    %v252 = vpop.f32.mrb[0].mxu0
    %v253 = vadd.f32 %v84, %v252
    %v254 = vpop.f32.mrb[0].mxu0
    %255 = vdwg.mxu0
    %v256 = vmul.f32 %v223, 0.5
    %v257 = vmul.f32 %v228, 0.5
    %v258 = vmul.f32 %v233, 0.5
    %v259 = vmul.f32 %v238, 0.5
    %v260 = vmul.f32 %v243, 0.5
    %v261 = vmul.f32 %v248, 0.5
    %v262 = vmul.f32 %v253, 0.5
    %v263 = vrcp.pop 1.4142135
    %v264 = vmul.f32 %v223, %v263
    %v265 = vmul.f32 %v228, %v263
    %v266 = vmul.f32 %v233, %v263
    %v267 = vmul.f32 %v238, %v263
    %v268 = vmul.f32 %v243, %v263
    %v269 = vmul.f32 %v248, %v263
    %v270 = vmul.f32 %v253, %v263
    %v271 = verf.f32.pop %v264
    %v272 = verf.f32.pop %v265
    %v273 = verf.f32.pop %v266
    %v274 = verf.f32.pop %v267
    %v275 = verf.f32.pop %v268
    %v276 = verf.f32.pop %v269
    %v277 = verf.f32.pop %v270
    %v278 = vadd.f32 %v271, 1.0
    %v279 = vadd.f32 %v272, 1.0
    %v280 = vadd.f32 %v273, 1.0
    %v281 = vadd.f32 %v274, 1.0
    %v282 = vadd.f32 %v275, 1.0
    %v283 = vadd.f32 %v276, 1.0
    %v284 = vadd.f32 %v277, 1.0
    %v285 = vmul.f32 %v256, %v278
    %v286 = vmul.f32 %v257, %v279
    %v287 = vmul.f32 %v258, %v280
    %v288 = vmul.f32 %v259, %v281
    %v289 = vmul.f32 %v260, %v282
    %v290 = vmul.f32 %v261, %v283
    %v291 = vmul.f32 %v262, %v284
    %v292 = vld [vmem:[%s3] sm:$0x1f]
    %v293 = vld [vmem:[%s4] sm:$0x1f]
    %295 = vset.pattern.permute.xlu0 0
    %296 = vperm.xlu0 %295, %v293
    %v297 = vpop.permute.xlu0 %296
    %vm299 = vcmask 408576
    %v301 = vsel %vm299, %v292, 0
    %vm303 = vcmask 1041408
    %v305 = vsel %vm303, %v291, 0
    %307 = vmatprep.subr.mxu0 0.0
    %308 = vmatpush1.msra.mxu0 %v285
    %309 = vmatprep.subr.mxu0 0.0
    %310 = vmatpush1.msra.mxu0 %v286
    %311 = vmatprep.subr.mxu0 0.0
    %312 = vmatpush1.msra.mxu0 %v287
    %313 = vmatprep.subr.mxu0 0.0
    %314 = vmatpush1.msra.mxu0 %v288
    %315 = vmatprep.subr.mxu0 0.0
    %316 = vmatpush1.msra.mxu0 %v289
    %317 = vmatprep.subr.mxu0 0.0
    %318 = vmatpush1.msra.mxu0 %v290
    %319 = vmatprep.subr.mxu0 0.0
    %320 = vmatpush1.msra.mxu0 %v305
    %321 = vmatprep.subr.mxu0 0.0
    %322 = vmatpush1.msra.mxu0 0.0
    %323 = vmatprep.subr.mxu0 0.0
    %324 = vmatpush1.msra.mxu0 0.0
    %325 = vmatprep.subr.mxu0 0.0
    %326 = vmatpush1.msra.mxu0 0.0
    %327 = vmatprep.subr.mxu0 0.0
    %328 = vmatpush1.msra.mxu0 0.0
    %329 = vmatprep.subr.mxu0 0.0
    %330 = vmatpush1.msra.mxu0 0.0
    %331 = vmatprep.subr.mxu0 0.0
    %332 = vmatpush1.msra.mxu0 0.0
    %333 = vmatprep.subr.mxu0 0.0
    %334 = vmatpush1.msra.mxu0 0.0
    %335 = vmatprep.subr.mxu0 0.0
    %336 = vmatpush1.msra.mxu0 0.0
    %337 = vmatprep.subr.mxu0 0.0
    %338 = vmatpush1.msra.mxu0 0.0
    %339 = vmatprep.subr.mxu0 0.0
    %340 = vmatpush1.msra.mxu0 0.0
    %341 = vmatprep.subr.mxu0 0.0
    %342 = vmatpush1.msra.mxu0 0.0
    %343 = vmatprep.subr.mxu0 0.0
    %344 = vmatpush1.msra.mxu0 0.0
    %345 = vmatprep.subr.mxu0 0.0
    %346 = vmatpush1.msra.mxu0 0.0
    %347 = vmatprep.subr.mxu0 0.0
    %348 = vmatpush1.msra.mxu0 0.0
    %349 = vmatprep.subr.mxu0 0.0
    %350 = vmatpush1.msra.mxu0 0.0
    %351 = vmatprep.subr.mxu0 0.0
    %352 = vmatpush1.msra.mxu0 0.0
    %353 = vmatprep.subr.mxu0 0.0
    %354 = vmatpush1.msra.mxu0 0.0
    %355 = vmatprep.subr.mxu0 0.0
    %356 = vmatpush1.msra.mxu0 0.0
    %357 = vmatprep.subr.mxu0 0.0
    %358 = vmatpush1.msra.mxu0 0.0
    %359 = vmatprep.subr.mxu0 0.0
    %360 = vmatpush1.msra.mxu0 0.0
    %361 = vmatprep.subr.mxu0 0.0
    %362 = vmatpush1.msra.mxu0 0.0
    %363 = vmatprep.subr.mxu0 0.0
    %364 = vmatpush1.msra.mxu0 0.0
    %365 = vmatprep.subr.mxu0 0.0
    %366 = vmatpush1.msra.mxu0 0.0
    %367 = vmatprep.subr.mxu0 0.0
    %368 = vmatpush1.msra.mxu0 0.0
    %369 = vmatprep.subr.mxu0 0.0
    %370 = vmatpush1.msra.mxu0 0.0
    %371 = vmatprep.mubr.f32.mxu0 0.0
    %372 = vmatmul.mubr.f32.gmra.mrb[0].mxu0 %v301
    %v373 = vpop.f32.mrb[0].mxu0
    %v374 = vadd.f32 %v297, %v373
    %v375 = vpop.f32.mrb[0].mxu0
    %376 = vdwg.mxu0
    %377 = vst [vmem:[#allocation2] sm:$0x1f] %v374
    // Predicated region
    $region22: #{tpu_custom_call.1} parent=1 // pred_check
      _
    $region23: #{tpu_custom_call.1} parent=1 // pred_check_branch
      %379 = sbr.rel (0) target = $region25
    $region24: #{tpu_custom_call.1} parent=1 // pred_region
      %s381 = ssub.s32 128, 128
      %382 = vsyncadd [#allocation3], %s381
      %s384 = sshll.u32 [#allocation2], 4
      %s385 = int_to_ptr.vmem [resolvable:$true] %s384
      %387 = dma.vmem_to_hbm [thread:$0]  %s385, 128, %s5, [#allocation3]
    $region25: #{tpu_custom_call.1} parent=1 // pred_fallthru
      _
    // Predicated region
    $region26: #{tpu_custom_call.1} parent=1 // pred_check
      _
    $region27: #{tpu_custom_call.1} parent=1 // pred_check_branch
      %389 = sbr.rel (0) target = $region29
    $region28: #{tpu_custom_call.1} parent=1 // pred_region
      %390 = dma.done [#allocation3], 128
    $region29: #{tpu_custom_call.1} parent=1 // pred_fallthru
      _
    %391 = vsyncpa [#allocation3], 1

</llo_original>
